<compile_context>
chip_gen: v7x
topology: tpu7x:2x2x1
jax: 0.10.0
libtpu: 0.0.40
codegen_flags: <defaults>
</compile_context>

<pallas_src>
import functools

import jax
import jax.numpy as jnp
import numpy as np
from jax import lax
from jax.experimental import pallas as pl
from jax.experimental.pallas import tpu as pltpu

EPS = 1e-5
LRELU_SLOPE = 0.01
VMEM_LIMIT = 32 * 1024 * 1024  # safe on v5e/v6e (128 MiB) and v7x (64 MiB)


def _round_up(x, m):
    return (x + m - 1) // m * m


# ----------------------------- Pallas kernels ------------------------------ #

def _conv1_bn_lrelu_kernel(x_ref, w_ref, shift_ref, o_ref, *, shifts, win_len):
    """conv1 (stride 1, pad 1) + folded-BN + LeakyReLU for one image.

    x_ref:     (1, Cin_p, Hp*Wp) f32  -- padded image, channels on sublanes,
                                         flattened spatial on lanes.
    w_ref:     (Cout, 9*Cin_p)  bf16  -- BN scale folded in.
    shift_ref: (Cout, 1)        f32   -- BN shift (incl. conv bias / mean).
    o_ref:     (1, Cout, H*Wp)  bf16  -- flattened output (junk cols sliced off
                                         in the wrapper).
    """
    xv = x_ref[0]                                           # (Cin_p, Hp*Wp) f32
    # Build the (9*Cin_p, L) patch matrix fully in VMEM: one lane-offset slice
    # per (kh, kw).  No HBM im2col, no 9x read amplification.
    patches = jnp.concatenate([xv[:, s:s + win_len] for s in shifts], axis=0)
    patches = patches.astype(jnp.bfloat16)                  # bf16 MXU operand
    acc = jnp.dot(w_ref[...], patches,
                  preferred_element_type=jnp.float32)       # (Cout, L) f32
    y = acc + shift_ref[...]                                # BN shift (f32)
    y = jnp.where(y > 0, y, LRELU_SLOPE * y)                # LeakyReLU(0.01)
    o_ref[0] = y.astype(o_ref.dtype)


def _conv2_add_kernel(p2_ref, w2_ref, p11_ref, w11_ref, b_ref, o_ref):
    """Fused conv2 + shortcut conv11 + bias + residual add (row tile)."""
    main = jnp.dot(p2_ref[...], w2_ref[...], preferred_element_type=jnp.float32)
    sc = jnp.dot(p11_ref[...], w11_ref[...], preferred_element_type=jnp.float32)
    o_ref[...] = (main + sc + b_ref[...]).astype(o_ref.dtype)


# ------------------------------ JAX wrapper --------------------------------- #

def init_params(key, in_depth, depth):
    ks = jax.random.split(key, 10)
    p = {
        "w1":  jax.random.normal(ks[0], (3, 3, in_depth, depth), jnp.float32) * 0.1,
        "b1":  jax.random.normal(ks[1], (depth,), jnp.float32) * 0.1,
        "w2":  jax.random.normal(ks[2], (3, 3, depth, depth), jnp.float32) * 0.1,
        "b2":  jax.random.normal(ks[3], (depth,), jnp.float32) * 0.1,
        "w11": jax.random.normal(ks[4], (3, 3, in_depth, depth), jnp.float32) * 0.1,
        "b11": jax.random.normal(ks[5], (depth,), jnp.float32) * 0.1,
        # BatchNorm2d(depth) params / running stats (eval mode).
        "gamma": 1.0 + 0.1 * jax.random.normal(ks[6], (depth,), jnp.float32),
        "beta":  0.1 * jax.random.normal(ks[7], (depth,), jnp.float32),
        "rm":    0.1 * jax.random.normal(ks[8], (depth,), jnp.float32),
        "rv":    0.5 + jnp.abs(jax.random.normal(ks[9], (depth,), jnp.float32)),
    }
    return p


def residual_block_pallas(x_nchw, params):
    x = x_nchw.astype(jnp.float32)
    n, cin, h, w = x.shape
    depth = params["w1"].shape[-1]
    ho = (h + 2 - 3) // 3 + 1
    wo = (w + 2 - 3) // 3 + 1

    cin_p = _round_up(cin, 8)            # sublane-aligned input channels
    cp = _round_up(depth, 128)           # lane-dense output channels (stage 2)
    wp = w + 2
    win_len = h * wp                     # flattened output length (junk cols at w>=W)
    shifts = tuple(kh * wp + kw for kh in range(3) for kw in range(3))
    flat = (h + 3) * wp                  # pad H by (1,2) so all shifted reads stay in-bounds

    # ---- fold BN into conv1: y = (conv(x)+b1 - rm)/sqrt(rv+eps)*gamma + beta ----
    scale = params["gamma"] / jnp.sqrt(params["rv"] + EPS)
    shift = (params["beta"] + (params["b1"] - params["rm"]) * scale).reshape(depth, 1)
    w1f = params["w1"] * scale[None, None, None, :]                    # (3,3,cin,depth)
    w1f = jnp.pad(w1f, ((0, 0), (0, 0), (0, cin_p - cin), (0, 0)))     # pad Cin
    w1f = jnp.transpose(w1f, (3, 0, 1, 2)).reshape(depth, 9 * cin_p)
    w1f = w1f.astype(jnp.bfloat16)

    # ---- stage 1: conv1 -> bn1 -> lrelu, one grid step per image ----
    # NOTE: per-image block; fine for these sizes.  For very large H*W this
    # would be row-tiled with a 2-row halo instead.
    xpad = jnp.pad(x, ((0, 0), (0, cin_p - cin), (1, 2), (1, 1)))      # (n,cin_p,h+3,wp)
    xflat = xpad.reshape(n, cin_p, flat)

    k1_flops = 2 * n * depth * 9 * cin_p * win_len
    k1_bytes = n * cin_p * flat * 4 + depth * 9 * cin_p * 2 + n * depth * win_len * 2
    y1 = pl.pallas_call(
        functools.partial(_conv1_bn_lrelu_kernel, shifts=shifts, win_len=win_len),
        out_shape=jax.ShapeDtypeStruct((n, depth, win_len), jnp.bfloat16),
        grid=(n,),
        in_specs=[
            pl.BlockSpec((1, cin_p, flat), lambda i: (i, 0, 0)),
            pl.BlockSpec((depth, 9 * cin_p), lambda i: (0, 0)),
            pl.BlockSpec((depth, 1), lambda i: (0, 0)),
        ],
        out_specs=pl.BlockSpec((1, depth, win_len), lambda i: (i, 0, 0)),
        compiler_params=pltpu.CompilerParams(
            dimension_semantics=("parallel",),
            vmem_limit_bytes=VMEM_LIMIT),
        cost_estimate=pl.CostEstimate(flops=k1_flops, transcendentals=0,
                                      bytes_accessed=k1_bytes),
    )(xflat, w1f, shift)
    # TODO(synk): nn.Dropout(0.5) in training mode (stochastic mask + 2x scale)
    # is not implemented; eval-mode identity is used.  pre_bn is dead code in
    # the reference forward (conv1 consumes x) and is therefore omitted.

    # Un-flatten stage-1 output; valid columns are the first W of each row.
    y1 = y1.reshape(n, depth, h, wp)[:, :, :, :w]                      # NCHW, bf16
    y1 = jnp.transpose(y1, (0, 2, 3, 1))                               # NHWC

    # ---- stage 2: conv2(stride 3) + conv11(stride 3) shortcut + add ----
    # stride == kernel -> patch extraction is pure space-to-depth (no 9x blowup).
    def s2d(t):  # (n, 3*ho, 3*wo, c) -> (n*ho*wo, 9*c), patch order (kh, kw, c)
        c = t.shape[-1]
        t = t.reshape(n, ho, 3, wo, 3, c).transpose(0, 1, 3, 2, 4, 5)
        return t.reshape(n * ho * wo, 9 * c)

    y1p = jnp.pad(y1, ((0, 0), (1, 1), (1, 1), (0, 0)))[:, :3 * ho, :3 * wo, :]
    p2 = s2d(y1p)                                                      # (m2, 9*depth) bf16
    xnhwc = jnp.transpose(x, (0, 2, 3, 1)).astype(jnp.bfloat16)
    xp = jnp.pad(xnhwc, ((0, 0), (1, 1), (1, 1), (0, 0)))[:, :3 * ho, :3 * wo, :]
    p11 = s2d(xp)                                                      # (m2, 9*cin) bf16

    m2 = n * ho * wo
    # Row tile: bounded (VMEM-safe for large inputs) but always yields grid >= 2.
    tm2 = 256 if m2 >= 512 else max(8, _round_up((m2 + 1) // 2, 8))
    m2p = _round_up(m2, tm2)
    p2 = jnp.pad(p2, ((0, m2p - m2), (0, 0)))
    p11 = jnp.pad(p11, ((0, m2p - m2), (0, 0)))

    w2m = jnp.pad(params["w2"].reshape(9 * depth, depth),
                  ((0, 0), (0, cp - depth))).astype(jnp.bfloat16)
    w11m = jnp.pad(params["w11"].reshape(9 * cin, depth),
                   ((0, 0), (0, cp - depth))).astype(jnp.bfloat16)
    bias = jnp.pad(params["b2"] + params["b11"], (0, cp - depth)).reshape(1, cp)

    k2_flops = 2 * m2p * cp * (9 * depth + 9 * cin)
    k2_bytes = (m2p * 9 * depth + m2p * 9 * cin) * 2 + m2p * cp * 4
    out = pl.pallas_call(
        _conv2_add_kernel,
        out_shape=jax.ShapeDtypeStruct((m2p, cp), jnp.float32),
        grid=(m2p // tm2,),
        in_specs=[
            pl.BlockSpec((tm2, 9 * depth), lambda i: (i, 0)),
            pl.BlockSpec((9 * depth, cp), lambda i: (0, 0)),
            pl.BlockSpec((tm2, 9 * cin), lambda i: (i, 0)),
            pl.BlockSpec((9 * cin, cp), lambda i: (0, 0)),
            pl.BlockSpec((1, cp), lambda i: (0, 0)),
        ],
        out_specs=pl.BlockSpec((tm2, cp), lambda i: (i, 0)),
        compiler_params=pltpu.CompilerParams(
            dimension_semantics=("parallel",),
            vmem_limit_bytes=VMEM_LIMIT),
        cost_estimate=pl.CostEstimate(flops=k2_flops, transcendentals=0,
                                      bytes_accessed=k2_bytes),
    )(p2, w2m, p11, w11m, bias)

    out = out[:m2, :depth].reshape(n, ho, wo, depth)
    return jnp.transpose(out, (0, 3, 1, 2))                            # NCHW


# ------------------------ pure-JAX reference (check) ------------------------ #

def residual_block_ref(x_nchw, params):
    x = jnp.transpose(x_nchw, (0, 2, 3, 1)).astype(jnp.float32)
    dn = ("NHWC", "HWIO", "NHWC")

    def conv(inp, wgt, b, s):
        return lax.conv_general_dilated(inp, wgt, (s, s), ((1, 1), (1, 1)),
                                        dimension_numbers=dn) + b

    prev_mp = conv(x, params["w11"], params["b11"], 3)
    out = conv(x, params["w1"], params["b1"], 1)
    out = (out - params["rm"]) / jnp.sqrt(params["rv"] + EPS) * params["gamma"] \
        + params["beta"]
    out = jnp.where(out > 0, out, LRELU_SLOPE * out)
    out = conv(out, params["w2"], params["b2"], 3)
    out = out + prev_mp
    return jnp.transpose(out, (0, 3, 1, 2))


if __name__ == "__main__":
    key = jax.random.PRNGKey(0)
    kx, kp = jax.random.split(key)
    in_depth, depth = 4, 8
    x = jax.random.normal(kx, (2, in_depth, 16, 16), jnp.float32)  # NCHW input
    params = init_params(kp, in_depth, depth)

    fwd = jax.jit(residual_block_pallas)
    out = jax.block_until_ready(fwd(x, params))
    assert out.shape == (2, depth, 6, 6), out.shape

    ref = residual_block_ref(x, params)
    # Matmul operands are bf16 (per perf review) while the reference is pure
    # f32, so the comparison tolerance is set accordingly.
    np.testing.assert_allclose(np.asarray(out), np.asarray(ref),
                               rtol=5e-2, atol=5e-2)
    print("KERNEL_OK")
</pallas_src>

<mosaic_0001>
module attributes {stable_mosaic.version = 11 : i64} {
  func.func @_conv1_bn_lrelu_kernel(%arg0: i32, %arg1: memref<1x8x342xf32, #tpu.memory_space<vmem>>, %arg2: memref<8x72xbf16, #tpu.memory_space<vmem>>, %arg3: memref<8x1xf32, #tpu.memory_space<vmem>>, %arg4: memref<1x8x288xbf16, #tpu.memory_space<vmem>>) attributes {dimension_semantics = [#tpu.dimension_semantics<parallel>], iteration_bounds = array<i64: 2>, scalar_prefetch = 0 : i64, scratch_operands = 0 : i64, tpu.core_type = #tpu.core_type<tc>, window_params = [{transform_indices = @transform_0, window_bounds = array<i64: 1, 8, 342>}, {pipeline_mode = #tpu.pipeline_mode<synchronous>, transform_indices = @transform_1, window_bounds = array<i64: 8, 72>}, {pipeline_mode = #tpu.pipeline_mode<synchronous>, transform_indices = @transform_2, window_bounds = array<i64: 8, 1>}, {transform_indices = @transform_3, window_bounds = array<i64: 1, 8, 288>}]} {
    %c0 = arith.constant 0 : index
    %c0_0 = arith.constant 0 : index
    %c0_1 = arith.constant 0 : index
    %0 = vector.load %arg1[%c0, %c0_0, %c0_1] : memref<1x8x342xf32, #tpu.memory_space<vmem>>, vector<1x8x342xf32>
    %1 = vector.shape_cast %0 : vector<1x8x342xf32> to vector<8x342xf32>
    %2 = vector.extract_strided_slice %1 {offsets = [0, 0], sizes = [8, 288], strides = [1, 1]} : vector<8x342xf32> to vector<8x288xf32>
    %3 = vector.extract_strided_slice %1 {offsets = [0, 1], sizes = [8, 288], strides = [1, 1]} : vector<8x342xf32> to vector<8x288xf32>
    %4 = vector.extract_strided_slice %1 {offsets = [0, 2], sizes = [8, 288], strides = [1, 1]} : vector<8x342xf32> to vector<8x288xf32>
    %5 = vector.extract_strided_slice %1 {offsets = [0, 18], sizes = [8, 288], strides = [1, 1]} : vector<8x342xf32> to vector<8x288xf32>
    %6 = vector.extract_strided_slice %1 {offsets = [0, 19], sizes = [8, 288], strides = [1, 1]} : vector<8x342xf32> to vector<8x288xf32>
    %7 = vector.extract_strided_slice %1 {offsets = [0, 20], sizes = [8, 288], strides = [1, 1]} : vector<8x342xf32> to vector<8x288xf32>
    %8 = vector.extract_strided_slice %1 {offsets = [0, 36], sizes = [8, 288], strides = [1, 1]} : vector<8x342xf32> to vector<8x288xf32>
    %9 = vector.extract_strided_slice %1 {offsets = [0, 37], sizes = [8, 288], strides = [1, 1]} : vector<8x342xf32> to vector<8x288xf32>
    %10 = vector.extract_strided_slice %1 {offsets = [0, 38], sizes = [8, 288], strides = [1, 1]} : vector<8x342xf32> to vector<8x288xf32>
    %11 = tpu.concatenate %2, %3, %4, %5, %6, %7, %8, %9, %10 in 0 : vector<8x288xf32>, vector<8x288xf32>, vector<8x288xf32>, vector<8x288xf32>, vector<8x288xf32>, vector<8x288xf32>, vector<8x288xf32>, vector<8x288xf32>, vector<8x288xf32> -> vector<72x288xf32>
    %12 = arith.truncf %11 : vector<72x288xf32> to vector<72x288xbf16>
    %c0_2 = arith.constant 0 : index
    %c0_3 = arith.constant 0 : index
    %13 = vector.load %arg2[%c0_2, %c0_3] : memref<8x72xbf16, #tpu.memory_space<vmem>>, vector<8x72xbf16>
    %cst = arith.constant dense<0.000000e+00> : vector<8x288xf32>
    %14 = tpu.matmul %13, %12, %cst {dimension_numbers = #tpu.dot_dimension_numbers<[1], [0], [0], [1], [0, 0, 1, 1], [], []>} : vector<8x72xbf16>, vector<72x288xbf16>, vector<8x288xf32> -> vector<8x288xf32>
    %c0_4 = arith.constant 0 : index
    %c0_5 = arith.constant 0 : index
    %15 = vector.load %arg3[%c0_4, %c0_5] : memref<8x1xf32, #tpu.memory_space<vmem>>, vector<8x1xf32>
    %16 = vector.broadcast %15 : vector<8x1xf32> to vector<8x288xf32>
    %17 = arith.addf %14, %16 : vector<8x288xf32>
    %cst_6 = arith.constant 0.000000e+00 : f32
    %18 = vector.broadcast %cst_6 : f32 to vector<8x288xf32>
    %19 = arith.cmpf ogt, %17, %18 : vector<8x288xf32>
    %cst_7 = arith.constant 0.00999999977 : f32
    %20 = vector.broadcast %cst_7 : f32 to vector<8x288xf32>
    %21 = arith.mulf %20, %17 : vector<8x288xf32>
    %22 = arith.select %19, %17, %21 : vector<8x288xi1>, vector<8x288xf32>
    %23 = arith.truncf %22 : vector<8x288xf32> to vector<8x288xbf16>
    %c0_8 = arith.constant 0 : index
    %c0_9 = arith.constant 0 : index
    %c0_10 = arith.constant 0 : index
    %24 = vector.load %arg4[%c0_8, %c0_9, %c0_10] : memref<1x8x288xbf16, #tpu.memory_space<vmem>>, vector<1x8x288xbf16>
    %25 = vector.shape_cast %24 : vector<1x8x288xbf16> to vector<8x288xbf16>
    %26 = vector.shape_cast %23 : vector<8x288xbf16> to vector<1x8x288xbf16>
    tpu.vector_store %arg4[%c0_8, %c0_9, %c0_10], %26 {strides = array<i32>} : memref<1x8x288xbf16, #tpu.memory_space<vmem>>, vector<1x8x288xbf16>,
    return
  }
  func.func @transform_0(%arg0: i32) -> (i32, i32, i32) {
    %c0_i32 = arith.constant 0 : i32
    %c0_i32_0 = arith.constant 0 : i32
    %c0_i32_1 = arith.constant 0 : i32
    return %arg0, %c0_i32, %c0_i32_0 : i32, i32, i32
  }
  func.func @transform_1(%arg0: i32) -> (i32, i32) {
    %c0_i32 = arith.constant 0 : i32
    %c0_i32_0 = arith.constant 0 : i32
    %c0_i32_1 = arith.constant 0 : i32
    return %c0_i32, %c0_i32_0 : i32, i32
  }
  func.func @transform_2(%arg0: i32) -> (i32, i32) {
    %c0_i32 = arith.constant 0 : i32
    %c0_i32_0 = arith.constant 0 : i32
    %c0_i32_1 = arith.constant 0 : i32
    return %c0_i32, %c0_i32_0 : i32, i32
  }
  func.func @transform_3(%arg0: i32) -> (i32, i32, i32) {
    %c0_i32 = arith.constant 0 : i32
    %c0_i32_0 = arith.constant 0 : i32
    %c0_i32_1 = arith.constant 0 : i32
    return %arg0, %c0_i32, %c0_i32_0 : i32, i32, i32
  }
}

module attributes {stable_mosaic.version = 11 : i64} {
  func.func @_conv2_add_kernel(%arg0: i32, %arg1: memref<40x72xbf16, #tpu.memory_space<vmem>>, %arg2: memref<72x128xbf16, #tpu.memory_space<vmem>>, %arg3: memref<40x36xbf16, #tpu.memory_space<vmem>>, %arg4: memref<36x128xbf16, #tpu.memory_space<vmem>>, %arg5: memref<1x128xf32, #tpu.memory_space<vmem>>, %arg6: memref<40x128xf32, #tpu.memory_space<vmem>>) attributes {dimension_semantics = [#tpu.dimension_semantics<parallel>], iteration_bounds = array<i64: 2>, scalar_prefetch = 0 : i64, scratch_operands = 0 : i64, tpu.core_type = #tpu.core_type<tc>, window_params = [{transform_indices = @transform_0, window_bounds = array<i64: 40, 72>}, {pipeline_mode = #tpu.pipeline_mode<synchronous>, transform_indices = @transform_1, window_bounds = array<i64: 72, 128>}, {transform_indices = @transform_2, window_bounds = array<i64: 40, 36>}, {pipeline_mode = #tpu.pipeline_mode<synchronous>, transform_indices = @transform_3, window_bounds = array<i64: 36, 128>}, {pipeline_mode = #tpu.pipeline_mode<synchronous>, transform_indices = @transform_4, window_bounds = array<i64: 1, 128>}, {transform_indices = @transform_5, window_bounds = array<i64: 40, 128>}]} {
    %c0 = arith.constant 0 : index
    %c0_0 = arith.constant 0 : index
    %0 = vector.load %arg1[%c0, %c0_0] : memref<40x72xbf16, #tpu.memory_space<vmem>>, vector<40x72xbf16>
    %c0_1 = arith.constant 0 : index
    %c0_2 = arith.constant 0 : index
    %1 = vector.load %arg2[%c0_1, %c0_2] : memref<72x128xbf16, #tpu.memory_space<vmem>>, vector<72x128xbf16>
    %cst = arith.constant dense<0.000000e+00> : vector<40x128xf32>
    %2 = tpu.matmul %0, %1, %cst {dimension_numbers = #tpu.dot_dimension_numbers<[1], [0], [0], [1], [0, 0, 1, 1], [], []>} : vector<40x72xbf16>, vector<72x128xbf16>, vector<40x128xf32> -> vector<40x128xf32>
    %c0_3 = arith.constant 0 : index
    %c0_4 = arith.constant 0 : index
    %3 = vector.load %arg3[%c0_3, %c0_4] : memref<40x36xbf16, #tpu.memory_space<vmem>>, vector<40x36xbf16>
    %c0_5 = arith.constant 0 : index
    %c0_6 = arith.constant 0 : index
    %4 = vector.load %arg4[%c0_5, %c0_6] : memref<36x128xbf16, #tpu.memory_space<vmem>>, vector<36x128xbf16>
    %cst_7 = arith.constant dense<0.000000e+00> : vector<40x128xf32>
    %5 = tpu.matmul %3, %4, %cst_7 {dimension_numbers = #tpu.dot_dimension_numbers<[1], [0], [0], [1], [0, 0, 1, 1], [], []>} : vector<40x36xbf16>, vector<36x128xbf16>, vector<40x128xf32> -> vector<40x128xf32>
    %6 = arith.addf %2, %5 : vector<40x128xf32>
    %c0_8 = arith.constant 0 : index
    %c0_9 = arith.constant 0 : index
    %7 = vector.load %arg5[%c0_8, %c0_9] : memref<1x128xf32, #tpu.memory_space<vmem>>, vector<1x128xf32>
    %8 = vector.broadcast %7 : vector<1x128xf32> to vector<40x128xf32>
    %9 = arith.addf %6, %8 : vector<40x128xf32>
    %c0_10 = arith.constant 0 : index
    %c0_11 = arith.constant 0 : index
    %10 = vector.load %arg6[%c0_10, %c0_11] : memref<40x128xf32, #tpu.memory_space<vmem>>, vector<40x128xf32>
    tpu.vector_store %arg6[%c0_10, %c0_11], %9 {strides = array<i32>} : memref<40x128xf32, #tpu.memory_space<vmem>>, vector<40x128xf32>,
    return
  }
  func.func @transform_0(%arg0: i32) -> (i32, i32) {
    %c0_i32 = arith.constant 0 : i32
    %c0_i32_0 = arith.constant 0 : i32
    return %arg0, %c0_i32 : i32, i32
  }
  func.func @transform_1(%arg0: i32) -> (i32, i32) {
    %c0_i32 = arith.constant 0 : i32
    %c0_i32_0 = arith.constant 0 : i32
    %c0_i32_1 = arith.constant 0 : i32
    return %c0_i32, %c0_i32_0 : i32, i32
  }
  func.func @transform_2(%arg0: i32) -> (i32, i32) {
    %c0_i32 = arith.constant 0 : i32
    %c0_i32_0 = arith.constant 0 : i32
    return %arg0, %c0_i32 : i32, i32
  }
  func.func @transform_3(%arg0: i32) -> (i32, i32) {
    %c0_i32 = arith.constant 0 : i32
    %c0_i32_0 = arith.constant 0 : i32
    %c0_i32_1 = arith.constant 0 : i32
    return %c0_i32, %c0_i32_0 : i32, i32
  }
  func.func @transform_4(%arg0: i32) -> (i32, i32) {
    %c0_i32 = arith.constant 0 : i32
    %c0_i32_0 = arith.constant 0 : i32
    %c0_i32_1 = arith.constant 0 : i32
    return %c0_i32, %c0_i32_0 : i32, i32
  }
  func.func @transform_5(%arg0: i32) -> (i32, i32) {
    %c0_i32 = arith.constant 0 : i32
    %c0_i32_0 = arith.constant 0 : i32
    return %arg0, %c0_i32 : i32, i32
  }
}

</mosaic_0001>

<llo_original>
// kernel: residual_block_pallas.2
$region0: #{residual_block_pallas.2}
  #allocation0 [shape = 'u32[]', space=smem, size = 0x4, offset = 0x4, fixed_abs, tag = 'smem constant byte address 0x4 - core index']
  #allocation1 [shape = 'u32[144,128]{1,0:T(1,128)}', space=vmem, size = 0x12000, scoped, tag = 'internal scratch']
  %s0 = inlined_call_operand.vmem [shape: f32[2,8,342], index: 0, kind: input, shape index: {}]
  %s1 = inlined_call_operand.vmem [shape: bf16[8,72], index: 1, kind: input, shape index: {}]
  %s2 = inlined_call_operand.vmem [shape: f32[8,1], index: 2, kind: input, shape index: {}]
  %s3 = inlined_call_operand.vmem [shape: bf16[2,8,288], index: 3, kind: output, shape index: {}]
  %s4 = sld [smem:[#allocation0]]
  $region45: #{residual_block_pallas.2} parent=0
    _
  %s6 = ssub.s32 1, %s4
  %s7 = scalar_select 0, %s6, %s4
  loop: start=0, step=1, limit=4
  $region2: #{residual_block_pallas.2} parent=0 // loop_pre_header
    _
  $region3: #{residual_block_pallas.2} parent=0 // loop_header
    %s9 = sphi 0, %s13
    %p10 = scmp.ge.s32.totalorder %s9, 4
    %s19 = sphi 0, %s21
    %s22 = sphi 0, %s19
    %s23 = sphi 0, %s22
    %s39 = sphi 0, %s23
    %s43 = sphi 0, %s43
    %s45 = sphi 0, %s43
    %s46 = sphi 0, %s45
    %s60 = sphi 0, %s46
    %s64 = sphi 0, %s64
    %s66 = sphi 0, %s64
    %s67 = sphi 0, %s66
    %s81 = sphi 0, %s67
    %s87 = sphi 0, %s89
    %s90 = sphi 0, %s87
    %s91 = sphi 0, %s90
    %s107 = sphi 0, %s91
  $region4: #{residual_block_pallas.2} parent=0 // loop_header_branch
    %12 = sbr.rel (%p10) target = $region8
  $region5: #{residual_block_pallas.2} parent=0 // loop_body
    %s14 = ssub.s32 %s9, 1
    %s15 = ssub.s32 %s9, 2
    %s16 = sadd.s32 %s9, 1
    %s17 = ssub.s32 %s9, %s16
    %p18 = scmp.eq.s32.totalorder %s17, 0
    %s20 = sadd.s32 %s19, 1
    %s21 = scalar_select %p18, %s19, %s20
    %p24 = pneg %p18
    %p25 = scmp.eq.s32.totalorder %s9, 1
    %p26 = por %p24, %p25
    %p27 = scmp.ne.s32.totalorder %s19, %s22
    %p28 = scmp.eq.s32.totalorder %s9, 0
    %p29 = por %p27, %p28
    %p30 = scmp.ne.s32.totalorder %s19, %s22
    %p31 = scmp.eq.s32.totalorder %s14, 1
    %p32 = por %p30, %p31
    %p33 = scmp.ne.s32.totalorder %s22, %s23
    %p34 = scmp.eq.s32.totalorder %s14, 0
    %p35 = por %p33, %p34
    %p36 = scmp.ne.s32.totalorder %s22, %s23
    %p37 = scmp.eq.s32.totalorder %s15, 1
    %p38 = por %p36, %p37
    %p40 = scmp.ne.s32.totalorder %s23, %s39
    %p41 = scmp.eq.s32.totalorder %s15, 0
    %p42 = por %p40, %p41
    %s44 = sadd.s32 %s43, 1
    %p47 = scmp.eq.s32.totalorder %s9, 1
    %p48 = scmp.ne.s32.totalorder %s43, %s45
    %p49 = scmp.eq.s32.totalorder %s9, 0
    %p50 = por %p48, %p49
    %p51 = scmp.ne.s32.totalorder %s43, %s45
    %p52 = scmp.eq.s32.totalorder %s14, 1
    %p53 = por %p51, %p52
    %p54 = scmp.ne.s32.totalorder %s45, %s46
    %p55 = scmp.eq.s32.totalorder %s14, 0
    %p56 = por %p54, %p55
    %p57 = scmp.ne.s32.totalorder %s45, %s46
    %p58 = scmp.eq.s32.totalorder %s15, 1
    %p59 = por %p57, %p58
    %p61 = scmp.ne.s32.totalorder %s46, %s60
    %p62 = scmp.eq.s32.totalorder %s15, 0
    %p63 = por %p61, %p62
    %s65 = sadd.s32 %s64, 1
    %p68 = scmp.eq.s32.totalorder %s9, 1
    %p69 = scmp.ne.s32.totalorder %s64, %s66
    %p70 = scmp.eq.s32.totalorder %s9, 0
    %p71 = por %p69, %p70
    %p72 = scmp.ne.s32.totalorder %s64, %s66
    %p73 = scmp.eq.s32.totalorder %s14, 1
    %p74 = por %p72, %p73
    %p75 = scmp.ne.s32.totalorder %s66, %s67
    %p76 = scmp.eq.s32.totalorder %s14, 0
    %p77 = por %p75, %p76
    %p78 = scmp.ne.s32.totalorder %s66, %s67
    %p79 = scmp.eq.s32.totalorder %s15, 1
    %p80 = por %p78, %p79
    %p82 = scmp.ne.s32.totalorder %s67, %s81
    %p83 = scmp.eq.s32.totalorder %s15, 0
    %p84 = por %p82, %p83
    %s85 = ssub.s32 %s9, %s16
    %p86 = scmp.eq.s32.totalorder %s85, 0
    %s88 = sadd.s32 %s87, 1
    %s89 = scalar_select %p86, %s87, %s88
    %p92 = pneg %p86
    %p93 = scmp.eq.s32.totalorder %s9, 1
    %p94 = por %p92, %p93
    %p95 = scmp.ne.s32.totalorder %s87, %s90
    %p96 = scmp.eq.s32.totalorder %s9, 0
    %p97 = por %p95, %p96
    %p98 = scmp.ne.s32.totalorder %s87, %s90
    %p99 = scmp.eq.s32.totalorder %s14, 1
    %p100 = por %p98, %p99
    %p101 = scmp.ne.s32.totalorder %s90, %s91
    %p102 = scmp.eq.s32.totalorder %s14, 0
    %p103 = por %p101, %p102
    %p104 = scmp.ne.s32.totalorder %s90, %s91
    %p105 = scmp.eq.s32.totalorder %s15, 1
    %p106 = por %p104, %p105
    %p108 = scmp.ne.s32.totalorder %s91, %s107
    %p109 = scmp.eq.s32.totalorder %s15, 0
    %p110 = por %p108, %p109
    %p111 = scmp.le.s32.totalorder 1, %s9
    %p112 = scmp.lt.s32.totalorder %s9, 3
    %p113 = pnand %p111, %p112
    %p114 = pneg %p113
    // Predicated region
    $region9: #{residual_block_pallas.2} parent=5 // pred_check
      _
    $region10: #{residual_block_pallas.2} parent=5 // pred_check_branch
      %116 = sbr.rel (%p113) target = $region12
    $region11: #{residual_block_pallas.2} parent=5 // pred_region
      %s117 = ssub.s32 %s9, 1
      // Predicated region
      $region13: #{residual_block_pallas.2} parent=11 // pred_check
        %p118 = pneg %p56
      $region14: #{residual_block_pallas.2} parent=11 // pred_check_branch
        %120 = sbr.rel (%p118) target = $region16
      $region15: #{residual_block_pallas.2} parent=11 // pred_region
        _
      $region16: #{residual_block_pallas.2} parent=11 // pred_fallthru
        _
      // Predicated region
      $region17: #{residual_block_pallas.2} parent=11 // pred_check
        %p121 = pneg %p77
      $region18: #{residual_block_pallas.2} parent=11 // pred_check_branch
        %123 = sbr.rel (%p121) target = $region20
      $region19: #{residual_block_pallas.2} parent=11 // pred_region
        _
      $region20: #{residual_block_pallas.2} parent=11 // pred_fallthru
        _
    $region12: #{residual_block_pallas.2} parent=5 // pred_fallthru
      _
    %p124 = scmp.lt.s32.totalorder %s9, 2
    // Predicated region
    $region21: #{residual_block_pallas.2} parent=5 // pred_check
      %p125 = pneg %p124
    $region22: #{residual_block_pallas.2} parent=5 // pred_check_branch
      %127 = sbr.rel (%p125) target = $region24
    $region23: #{residual_block_pallas.2} parent=5 // pred_region
      // Predicated region
      $region25: #{residual_block_pallas.2} parent=23 // pred_check
        %p128 = pneg %p29
      $region26: #{residual_block_pallas.2} parent=23 // pred_check_branch
        %130 = sbr.rel (%p128) target = $region28
      $region27: #{residual_block_pallas.2} parent=23 // pred_region
        %p131 = scmp.lt.s32.totalorder %s9, 1
        %s132 = scalar_select %p131, %s9, 1
        %s133 = smul.addr %s132, 3
        %s134 = smul.addr %s133, 8
        %s135 = scalar_lea.vmem %s0, %s134
      $region28: #{residual_block_pallas.2} parent=23 // pred_fallthru
        _
    $region24: #{residual_block_pallas.2} parent=5 // pred_fallthru
      _
    %p136 = scmp.le.s32.totalorder 1, %s9
    %p137 = scmp.lt.s32.totalorder %s9, 3
    %p138 = pnand %p136, %p137
    %p139 = pneg %p138
    // Predicated region
    $region29: #{residual_block_pallas.2} parent=5 // pred_check
      _
    $region30: #{residual_block_pallas.2} parent=5 // pred_check_branch
      %141 = sbr.rel (%p138) target = $region32
    $region31: #{residual_block_pallas.2} parent=5 // pred_region
      %s142 = ssub.s32 %s9, 1
      %p143 = scmp.lt.s32.totalorder %s14, 1
      %s144 = scalar_select %p143, %s14, 1
      %s145 = smul.addr %s144, 3
      %s146 = smul.addr %s145, 8
      %s147 = scalar_lea.vmem %s0, %s146
      %p148 = pneg %p35
      %p149 = pneg %p32
      %p150 = pneg %p56
      %p151 = pneg %p53
      %p152 = pneg %p77
      %p153 = pneg %p74
      %p154 = pneg %p103
      %p155 = pneg %p100
      %p156 = scmp.lt.s32.totalorder %s14, 1
      %s157 = scalar_select %p156, %s14, 1
      %s158 = smul.addr %s157, 3
      %s159 = smul.addr %s158, 4
      %s160 = scalar_lea.vmem %s3, %s159
      %p161 = scmp.lt.s32.totalorder %s14, 1
      %s162 = scalar_select %p161, %s14, 1
      %s163 = smul.addr %s162, 3
      %s164 = smul.addr %s163, 8
      %s165 = scalar_lea.vmem %s0, %s164
      %p166 = scmp.lt.s32.totalorder %s14, 1
      %s167 = scalar_select %p166, %s14, 1
      %s168 = smul.addr %s167, 3
      %s169 = smul.addr %s168, 4
      %s170 = scalar_lea.vmem %s3, %s169
      %v172 = vld [vmem:[%s165] sm:$0xff]
      %v173 = vld [vmem:[%s165 + $0x8] sm:$0xff]
      %v174 = vld [vmem:[%s165 + $0x10] sm:$0xff]
      %178 = vrot.lane.b32.xlu0 %v172, 127
      %v179 = vpop.permute.xlu0 %178
      %180 = vrot.lane.b32.xlu0 %v173, 127
      %v181 = vpop.permute.xlu0 %180
      %182 = vrot.lane.b32.xlu0 %v174, 127
      %v183 = vpop.permute.xlu0 %182
      %vm184 = vcmask 1039360
      %v185 = vsel %vm184, %v179, %v181
      %v186 = vsel %vm184, %v181, %v183
      %190 = vrot.lane.b32.xlu0 %v172, 126
      %v191 = vpop.permute.xlu0 %190
      %192 = vrot.lane.b32.xlu0 %v173, 126
      %v193 = vpop.permute.xlu0 %192
      %194 = vrot.lane.b32.xlu0 %v174, 126
      %v195 = vpop.permute.xlu0 %194
      %vm196 = vcmask 1031168
      %v197 = vsel %vm196, %v191, %v193
      %v198 = vsel %vm196, %v193, %v195
      %202 = vrot.lane.b32.xlu0 %v172, 110
      %v203 = vpop.permute.xlu0 %202
      %204 = vrot.lane.b32.xlu0 %v173, 110
      %v205 = vpop.permute.xlu0 %204
      %206 = vrot.lane.b32.xlu0 %v174, 110
      %v207 = vpop.permute.xlu0 %206
      %vm208 = vcmask 900096
      %v209 = vsel %vm208, %v203, %v205
      %v210 = vsel %vm208, %v205, %v207
      %214 = vrot.lane.b32.xlu0 %v172, 109
      %v215 = vpop.permute.xlu0 %214
      %216 = vrot.lane.b32.xlu0 %v173, 109
      %v217 = vpop.permute.xlu0 %216
      %218 = vrot.lane.b32.xlu0 %v174, 109
      %v219 = vpop.permute.xlu0 %218
      %vm220 = vcmask 891904
      %v221 = vsel %vm220, %v215, %v217
      %v222 = vsel %vm220, %v217, %v219
      %226 = vrot.lane.b32.xlu0 %v172, 108
      %v227 = vpop.permute.xlu0 %226
      %228 = vrot.lane.b32.xlu0 %v173, 108
      %v229 = vpop.permute.xlu0 %228
      %230 = vrot.lane.b32.xlu0 %v174, 108
      %v231 = vpop.permute.xlu0 %230
      %vm232 = vcmask 883712
      %v233 = vsel %vm232, %v227, %v229
      %v234 = vsel %vm232, %v229, %v231
      %238 = vrot.lane.b32.xlu0 %v172, 92
      %v239 = vpop.permute.xlu0 %238
      %240 = vrot.lane.b32.xlu0 %v173, 92
      %v241 = vpop.permute.xlu0 %240
      %242 = vrot.lane.b32.xlu0 %v174, 92
      %v243 = vpop.permute.xlu0 %242
      %vm244 = vcmask 752640
      %v245 = vsel %vm244, %v239, %v241
      %v246 = vsel %vm244, %v241, %v243
      %250 = vrot.lane.b32.xlu0 %v172, 91
      %v251 = vpop.permute.xlu0 %250
      %252 = vrot.lane.b32.xlu0 %v173, 91
      %v253 = vpop.permute.xlu0 %252
      %254 = vrot.lane.b32.xlu0 %v174, 91
      %v255 = vpop.permute.xlu0 %254
      %vm256 = vcmask 744448
      %v257 = vsel %vm256, %v251, %v253
      %v258 = vsel %vm256, %v253, %v255
      %262 = vrot.lane.b32.xlu0 %v172, 90
      %v263 = vpop.permute.xlu0 %262
      %264 = vrot.lane.b32.xlu0 %v173, 90
      %v265 = vpop.permute.xlu0 %264
      %266 = vrot.lane.b32.xlu0 %v174, 90
      %v267 = vpop.permute.xlu0 %266
      %vm268 = vcmask 736256
      %v269 = vsel %vm268, %v263, %v265
      %v270 = vsel %vm268, %v265, %v267
      %v274 = vpack.c.bf16 %v185, %v172
      %v275 = vpack.c.bf16 %v186, %v173
      %v276 = vpack.c.bf16 %v183, %v174
      %v277 = vpack.c.bf16 %v209, %v197
      %v278 = vpack.c.bf16 %v210, %v198
      %v279 = vpack.c.bf16 %v207, %v195
      %v280 = vpack.c.bf16 %v233, %v221
      %v281 = vpack.c.bf16 %v234, %v222
      %v282 = vpack.c.bf16 %v231, %v219
      %v283 = vpack.c.bf16 %v257, %v245
      %v284 = vpack.c.bf16 %v258, %v246
      %v285 = vpack.c.bf16 %v255, %v243
      %v286 = vpack.c.bf16 %v269, %v269
      %v287 = vpack.c.bf16 %v270, %v270
      %v288 = vpack.c.bf16 %v267, %v267
      %v289 = vld [vmem:[%s1] sm:$0xf]
      %v290 = vld [vmem:[%s2] sm:$0xff]
      %292 = vset.pattern.permute.xlu0 0
      %293 = vperm.xlu0 %292, %v290
      %v294 = vpop.permute.xlu0 %293
      %vm296 = vcmask 588800
      %v298 = vsel %vm296, %v289, 0
      %vm300 = vcmask 1043456
      %v302 = vsel %vm300, %v286, 0
      %v305 = vsel %vm300, %v287, 0
      %v308 = vsel %vm300, %v288, 0
      %310 = vmatprep.subr.bf16.mxu0 %v275
      %311 = vmatpush1.bf16.msra.mxu0 %v274
      %312 = vmatprep.subr.bf16.mxu0 %v278
      %313 = vmatpush1.bf16.msra.mxu0 %v277
      %314 = vmatprep.subr.bf16.mxu0 %v281
      %315 = vmatpush1.bf16.msra.mxu0 %v280
      %316 = vmatprep.subr.bf16.mxu0 %v284
      %317 = vmatpush1.bf16.msra.mxu0 %v283
      %318 = vmatprep.subr.bf16.mxu0 %v305
      %319 = vmatpush1.bf16.msra.mxu0 %v302
      %320 = vmatprep.subr.bf16.mxu0 0
      %321 = vmatpush1.bf16.msra.mxu0 0
      %322 = vmatprep.subr.bf16.mxu0 0
      %323 = vmatpush1.bf16.msra.mxu0 0
      %324 = vmatprep.subr.bf16.mxu0 0
      %325 = vmatpush1.bf16.msra.mxu0 0
      %326 = vmatprep.subr.bf16.mxu0 0
      %327 = vmatpush1.bf16.msra.mxu0 0
      %328 = vmatprep.subr.bf16.mxu0 0
      %329 = vmatpush1.bf16.msra.mxu0 0
      %330 = vmatprep.subr.bf16.mxu0 0
      %331 = vmatpush1.bf16.msra.mxu0 0
      %332 = vmatprep.subr.bf16.mxu0 0
      %333 = vmatpush1.bf16.msra.mxu0 0
      %334 = vmatprep.subr.bf16.mxu0 0
      %335 = vmatpush1.bf16.msra.mxu0 0
      %336 = vmatprep.subr.bf16.mxu0 0
      %337 = vmatpush1.bf16.msra.mxu0 0
      %338 = vmatprep.subr.bf16.mxu0 0
      %339 = vmatpush1.bf16.msra.mxu0 0
      %340 = vmatprep.subr.bf16.mxu0 0
      %341 = vmatpush1.bf16.msra.mxu0 0
      %342 = vmatprep.mubr.bf16.mxu0 0
      %343 = vmatmul.mubr.bf16.gmra.mrb[0].mxu0 %v298
      %v344 = vpop.f32.mrb[0].mxu0
      %v345 = vadd.f32 %v294, %v344
      %v346 = vpop.f32.mrb[0].mxu0
      %v347 = vadd.f32 %v294, %v346
      %v348 = vpop.f32.mrb[0].mxu0
      %v349 = vpop.f32.mrb[0].mxu0
      %350 = vdwg.mxu0
      %351 = vmatprep.subr.bf16.mxu0 0
      %352 = vmatpush1.bf16.msra.mxu0 %v276
      %353 = vmatprep.subr.bf16.mxu0 0
      %354 = vmatpush1.bf16.msra.mxu0 %v279
      %355 = vmatprep.subr.bf16.mxu0 0
      %356 = vmatpush1.bf16.msra.mxu0 %v282
      %357 = vmatprep.subr.bf16.mxu0 0
      %358 = vmatpush1.bf16.msra.mxu0 %v285
      %359 = vmatprep.subr.bf16.mxu0 0
      %360 = vmatpush1.bf16.msra.mxu0 %v308
      %361 = vmatprep.subr.bf16.mxu0 0
      %362 = vmatpush1.bf16.msra.mxu0 0
      %363 = vmatprep.subr.bf16.mxu0 0
      %364 = vmatpush1.bf16.msra.mxu0 0
      %365 = vmatprep.subr.bf16.mxu0 0
      %366 = vmatpush1.bf16.msra.mxu0 0
      %367 = vmatprep.subr.bf16.mxu0 0
      %368 = vmatpush1.bf16.msra.mxu0 0
      %369 = vmatprep.subr.bf16.mxu0 0
      %370 = vmatpush1.bf16.msra.mxu0 0
      %371 = vmatprep.subr.bf16.mxu0 0
      %372 = vmatpush1.bf16.msra.mxu0 0
      %373 = vmatprep.subr.bf16.mxu0 0
      %374 = vmatpush1.bf16.msra.mxu0 0
      %375 = vmatprep.subr.bf16.mxu0 0
      %376 = vmatpush1.bf16.msra.mxu0 0
      %377 = vmatprep.subr.bf16.mxu0 0
      %378 = vmatpush1.bf16.msra.mxu0 0
      %379 = vmatprep.subr.bf16.mxu0 0
      %380 = vmatpush1.bf16.msra.mxu0 0
      %381 = vmatprep.subr.bf16.mxu0 0
      %382 = vmatpush1.bf16.msra.mxu0 0
      %383 = vmatprep.mubr.bf16.mxu0 0
      %384 = vmatmul.mubr.bf16.gmra.mrb[0].mxu0 %v298
      %v385 = vpop.f32.mrb[0].mxu0
      %v386 = vadd.f32 %v294, %v385
      %v387 = vpop.f32.mrb[0].mxu0
      %v388 = vpop.f32.mrb[0].mxu0
      %v389 = vpop.f32.mrb[0].mxu0
      %390 = vdwg.mxu0
      %vm391 = vcmp.gt.f32.partialorder %v345, 0.0
      %vm392 = vcmp.gt.f32.partialorder %v347, 0.0
      %vm393 = vcmp.gt.f32.partialorder %v386, 0.0
      %v394 = vmul.f32 %v345, 0.01
      %v395 = vmul.f32 %v347, 0.01
      %v396 = vmul.f32 %v386, 0.01
      %v397 = vsel %vm391, %v345, %v394
      %v398 = vsel %vm392, %v347, %v395
      %v399 = vsel %vm393, %v386, %v396
      %v400 = vpack.c.bf16 %v397, %v397
      %v401 = vpack.c.bf16 %v398, %v398
      %v402 = vpack.c.bf16 %v399, %v399
      %v406 = vunpack.c.l.b16 %v400
      %v407 = vunpack.c.l.b16 %v401
      %v408 = vunpack.c.l.b16 %v402
      %v409 = vpack.c.b16 %v407, %v406
      %v410 = vpack.c.b16 %v408, %v408
      %413 = vst [vmem:[%s170] sm:$0xff] %v409
      %vm414 = vcmask 257024
      %415 = vst.msk [vmem:[%s170 + $0x8] sm:$0xf] %vm414, %v410
      %p416 = scmp.lt.s32.totalorder %s14, 1
      %s417 = scalar_select %p416, %s14, 1
      %s418 = smul.addr %s417, 3
      %s419 = smul.addr %s418, 4
      %s420 = scalar_lea.vmem %s3, %s419
      // Predicated region
      $region33: #{residual_block_pallas.2} parent=31 // pred_check
        %p421 = pneg %p100
      $region34: #{residual_block_pallas.2} parent=31 // pred_check_branch
        %423 = sbr.rel (%p421) target = $region36
      $region35: #{residual_block_pallas.2} parent=31 // pred_region
        _
      $region36: #{residual_block_pallas.2} parent=31 // pred_fallthru
        _
    $region32: #{residual_block_pallas.2} parent=5 // pred_fallthru
      _
    %p424 = scmp.le.s32.totalorder 2, %s9
    // Predicated region
    $region37: #{residual_block_pallas.2} parent=5 // pred_check
      %p425 = pneg %p424
    $region38: #{residual_block_pallas.2} parent=5 // pred_check_branch
      %427 = sbr.rel (%p425) target = $region40
    $region39: #{residual_block_pallas.2} parent=5 // pred_region
      %s428 = ssub.s32 %s9, 2
      // Predicated region
      $region41: #{residual_block_pallas.2} parent=39 // pred_check
        %p429 = pneg %p106
      $region42: #{residual_block_pallas.2} parent=39 // pred_check_branch
        %431 = sbr.rel (%p429) target = $region44
      $region43: #{residual_block_pallas.2} parent=39 // pred_region
        %p432 = scmp.lt.s32.totalorder %s15, 1
        %s433 = scalar_select %p432, %s15, 1
        %s434 = smul.addr %s433, 3
        %s435 = smul.addr %s434, 4
        %s436 = scalar_lea.vmem %s3, %s435
      $region44: #{residual_block_pallas.2} parent=39 // pred_fallthru
        _
    $region40: #{residual_block_pallas.2} parent=5 // pred_fallthru
      _
  $region6: #{residual_block_pallas.2} parent=0 // loop_footer
    %s13 = sadd.s32 1, %s9
  $region7: #{residual_block_pallas.2} parent=0 // loop_footer_branch
    %8 = sbr.rel target = $region3
  $region8: #{residual_block_pallas.2} parent=0 // loop_exit
    _

// kernel: residual_block_pallas.3
$region0: #{residual_block_pallas.3}
  #allocation0 [shape = 'u32[]', space=smem, size = 0x4, offset = 0x4, fixed_abs, tag = 'smem constant byte address 0x4 - core index']
  #allocation1 [shape = 'u32[144,128]{1,0:T(1,128)}', space=vmem, size = 0x12000, scoped, tag = 'internal scratch']
  %s0 = inlined_call_operand.vmem [shape: bf16[80,72], index: 0, kind: input, shape index: {}]
  %s1 = inlined_call_operand.vmem [shape: bf16[72,128], index: 1, kind: input, shape index: {}]
  %s2 = inlined_call_operand.vmem [shape: bf16[80,36], index: 2, kind: input, shape index: {}]
  %s3 = inlined_call_operand.vmem [shape: bf16[36,128], index: 3, kind: input, shape index: {}]
  %s4 = inlined_call_operand.vmem [shape: f32[1,128], index: 4, kind: input, shape index: {}]
  %s5 = inlined_call_operand.vmem [shape: f32[80,128], index: 5, kind: output, shape index: {}]
  %s6 = sld [smem:[#allocation0]]
  $region53: #{residual_block_pallas.3} parent=0
    _
  %s8 = ssub.s32 1, %s6
  %s9 = scalar_select 0, %s8, %s6
  loop: start=0, step=1, limit=4
  $region2: #{residual_block_pallas.3} parent=0 // loop_pre_header
    _
  $region3: #{residual_block_pallas.3} parent=0 // loop_header
    %s11 = sphi 0, %s15
    %p12 = scmp.ge.s32.totalorder %s11, 4
    %s21 = sphi 0, %s23
    %s24 = sphi 0, %s21
    %s25 = sphi 0, %s24
    %s41 = sphi 0, %s25
    %s45 = sphi 0, %s45
    %s47 = sphi 0, %s45
    %s48 = sphi 0, %s47
    %s62 = sphi 0, %s48
    %s68 = sphi 0, %s70
    %s71 = sphi 0, %s68
    %s72 = sphi 0, %s71
    %s88 = sphi 0, %s72
    %s92 = sphi 0, %s92
    %s94 = sphi 0, %s92
    %s95 = sphi 0, %s94
    %s109 = sphi 0, %s95
    %s113 = sphi 0, %s113
    %s115 = sphi 0, %s113
    %s116 = sphi 0, %s115
    %s130 = sphi 0, %s116
    %s136 = sphi 0, %s138
    %s139 = sphi 0, %s136
    %s140 = sphi 0, %s139
    %s156 = sphi 0, %s140
  $region4: #{residual_block_pallas.3} parent=0 // loop_header_branch
    %14 = sbr.rel (%p12) target = $region8
  $region5: #{residual_block_pallas.3} parent=0 // loop_body
    %s16 = ssub.s32 %s11, 1
    %s17 = ssub.s32 %s11, 2
    %s18 = sadd.s32 %s11, 1
    %s19 = ssub.s32 %s11, %s18
    %p20 = scmp.eq.s32.totalorder %s19, 0
    %s22 = sadd.s32 %s21, 1
    %s23 = scalar_select %p20, %s21, %s22
    %p26 = pneg %p20
    %p27 = scmp.eq.s32.totalorder %s11, 1
    %p28 = por %p26, %p27
    %p29 = scmp.ne.s32.totalorder %s21, %s24
    %p30 = scmp.eq.s32.totalorder %s11, 0
    %p31 = por %p29, %p30
    %p32 = scmp.ne.s32.totalorder %s21, %s24
    %p33 = scmp.eq.s32.totalorder %s16, 1
    %p34 = por %p32, %p33
    %p35 = scmp.ne.s32.totalorder %s24, %s25
    %p36 = scmp.eq.s32.totalorder %s16, 0
    %p37 = por %p35, %p36
    %p38 = scmp.ne.s32.totalorder %s24, %s25
    %p39 = scmp.eq.s32.totalorder %s17, 1
    %p40 = por %p38, %p39
    %p42 = scmp.ne.s32.totalorder %s25, %s41
    %p43 = scmp.eq.s32.totalorder %s17, 0
    %p44 = por %p42, %p43
    %s46 = sadd.s32 %s45, 1
    %p49 = scmp.eq.s32.totalorder %s11, 1
    %p50 = scmp.ne.s32.totalorder %s45, %s47
    %p51 = scmp.eq.s32.totalorder %s11, 0
    %p52 = por %p50, %p51
    %p53 = scmp.ne.s32.totalorder %s45, %s47
    %p54 = scmp.eq.s32.totalorder %s16, 1
    %p55 = por %p53, %p54
    %p56 = scmp.ne.s32.totalorder %s47, %s48
    %p57 = scmp.eq.s32.totalorder %s16, 0
    %p58 = por %p56, %p57
    %p59 = scmp.ne.s32.totalorder %s47, %s48
    %p60 = scmp.eq.s32.totalorder %s17, 1
    %p61 = por %p59, %p60
    %p63 = scmp.ne.s32.totalorder %s48, %s62
    %p64 = scmp.eq.s32.totalorder %s17, 0
    %p65 = por %p63, %p64
    %s66 = ssub.s32 %s11, %s18
    %p67 = scmp.eq.s32.totalorder %s66, 0
    %s69 = sadd.s32 %s68, 1
    %s70 = scalar_select %p67, %s68, %s69
    %p73 = pneg %p67
    %p74 = scmp.eq.s32.totalorder %s11, 1
    %p75 = por %p73, %p74
    %p76 = scmp.ne.s32.totalorder %s68, %s71
    %p77 = scmp.eq.s32.totalorder %s11, 0
    %p78 = por %p76, %p77
    %p79 = scmp.ne.s32.totalorder %s68, %s71
    %p80 = scmp.eq.s32.totalorder %s16, 1
    %p81 = por %p79, %p80
    %p82 = scmp.ne.s32.totalorder %s71, %s72
    %p83 = scmp.eq.s32.totalorder %s16, 0
    %p84 = por %p82, %p83
    %p85 = scmp.ne.s32.totalorder %s71, %s72
    %p86 = scmp.eq.s32.totalorder %s17, 1
    %p87 = por %p85, %p86
    %p89 = scmp.ne.s32.totalorder %s72, %s88
    %p90 = scmp.eq.s32.totalorder %s17, 0
    %p91 = por %p89, %p90
    %s93 = sadd.s32 %s92, 1
    %p96 = scmp.eq.s32.totalorder %s11, 1
    %p97 = scmp.ne.s32.totalorder %s92, %s94
    %p98 = scmp.eq.s32.totalorder %s11, 0
    %p99 = por %p97, %p98
    %p100 = scmp.ne.s32.totalorder %s92, %s94
    %p101 = scmp.eq.s32.totalorder %s16, 1
    %p102 = por %p100, %p101
    %p103 = scmp.ne.s32.totalorder %s94, %s95
    %p104 = scmp.eq.s32.totalorder %s16, 0
    %p105 = por %p103, %p104
    %p106 = scmp.ne.s32.totalorder %s94, %s95
    %p107 = scmp.eq.s32.totalorder %s17, 1
    %p108 = por %p106, %p107
    %p110 = scmp.ne.s32.totalorder %s95, %s109
    %p111 = scmp.eq.s32.totalorder %s17, 0
    %p112 = por %p110, %p111
    %s114 = sadd.s32 %s113, 1
    %p117 = scmp.eq.s32.totalorder %s11, 1
    %p118 = scmp.ne.s32.totalorder %s113, %s115
    %p119 = scmp.eq.s32.totalorder %s11, 0
    %p120 = por %p118, %p119
    %p121 = scmp.ne.s32.totalorder %s113, %s115
    %p122 = scmp.eq.s32.totalorder %s16, 1
    %p123 = por %p121, %p122
    %p124 = scmp.ne.s32.totalorder %s115, %s116
    %p125 = scmp.eq.s32.totalorder %s16, 0
    %p126 = por %p124, %p125
    %p127 = scmp.ne.s32.totalorder %s115, %s116
    %p128 = scmp.eq.s32.totalorder %s17, 1
    %p129 = por %p127, %p128
    %p131 = scmp.ne.s32.totalorder %s116, %s130
    %p132 = scmp.eq.s32.totalorder %s17, 0
    %p133 = por %p131, %p132
    %s134 = ssub.s32 %s11, %s18
    %p135 = scmp.eq.s32.totalorder %s134, 0
    %s137 = sadd.s32 %s136, 1
    %s138 = scalar_select %p135, %s136, %s137
    %p141 = pneg %p135
    %p142 = scmp.eq.s32.totalorder %s11, 1
    %p143 = por %p141, %p142
    %p144 = scmp.ne.s32.totalorder %s136, %s139
    %p145 = scmp.eq.s32.totalorder %s11, 0
    %p146 = por %p144, %p145
    %p147 = scmp.ne.s32.totalorder %s136, %s139
    %p148 = scmp.eq.s32.totalorder %s16, 1
    %p149 = por %p147, %p148
    %p150 = scmp.ne.s32.totalorder %s139, %s140
    %p151 = scmp.eq.s32.totalorder %s16, 0
    %p152 = por %p150, %p151
    %p153 = scmp.ne.s32.totalorder %s139, %s140
    %p154 = scmp.eq.s32.totalorder %s17, 1
    %p155 = por %p153, %p154
    %p157 = scmp.ne.s32.totalorder %s140, %s156
    %p158 = scmp.eq.s32.totalorder %s17, 0
    %p159 = por %p157, %p158
    %p160 = scmp.le.s32.totalorder 1, %s11
    %p161 = scmp.lt.s32.totalorder %s11, 3
    %p162 = pnand %p160, %p161
    %p163 = pneg %p162
    // Predicated region
    $region9: #{residual_block_pallas.3} parent=5 // pred_check
      _
    $region10: #{residual_block_pallas.3} parent=5 // pred_check_branch
      %165 = sbr.rel (%p162) target = $region12
    $region11: #{residual_block_pallas.3} parent=5 // pred_region
      %s166 = ssub.s32 %s11, 1
      // Predicated region
      $region13: #{residual_block_pallas.3} parent=11 // pred_check
        %p167 = pneg %p58
      $region14: #{residual_block_pallas.3} parent=11 // pred_check_branch
        %169 = sbr.rel (%p167) target = $region16
      $region15: #{residual_block_pallas.3} parent=11 // pred_region
        _
      $region16: #{residual_block_pallas.3} parent=11 // pred_fallthru
        _
      // Predicated region
      $region17: #{residual_block_pallas.3} parent=11 // pred_check
        %p170 = pneg %p105
      $region18: #{residual_block_pallas.3} parent=11 // pred_check_branch
        %172 = sbr.rel (%p170) target = $region20
      $region19: #{residual_block_pallas.3} parent=11 // pred_region
        _
      $region20: #{residual_block_pallas.3} parent=11 // pred_fallthru
        _
      // Predicated region
      $region21: #{residual_block_pallas.3} parent=11 // pred_check
        %p173 = pneg %p126
      $region22: #{residual_block_pallas.3} parent=11 // pred_check_branch
        %175 = sbr.rel (%p173) target = $region24
      $region23: #{residual_block_pallas.3} parent=11 // pred_region
        _
      $region24: #{residual_block_pallas.3} parent=11 // pred_fallthru
        _
    $region12: #{residual_block_pallas.3} parent=5 // pred_fallthru
      _
    %p176 = scmp.lt.s32.totalorder %s11, 2
    // Predicated region
    $region25: #{residual_block_pallas.3} parent=5 // pred_check
      %p177 = pneg %p176
    $region26: #{residual_block_pallas.3} parent=5 // pred_check_branch
      %179 = sbr.rel (%p177) target = $region28
    $region27: #{residual_block_pallas.3} parent=5 // pred_region
      // Predicated region
      $region29: #{residual_block_pallas.3} parent=27 // pred_check
        %p180 = pneg %p31
      $region30: #{residual_block_pallas.3} parent=27 // pred_check_branch
        %182 = sbr.rel (%p180) target = $region32
      $region31: #{residual_block_pallas.3} parent=27 // pred_region
        %s183 = smul.u32 5, %s11
        %p184 = scmp.lt.s32.totalorder %s183, 9
        %s185 = scalar_select %p184, %s183, 9
        %s186 = smul.addr %s185, 4
        %s187 = scalar_lea.vmem %s0, %s186
        %s188 = smul.u32 5, %s11
      $region32: #{residual_block_pallas.3} parent=27 // pred_fallthru
        _
      // Predicated region
      $region33: #{residual_block_pallas.3} parent=27 // pred_check
        %p189 = pneg %p78
      $region34: #{residual_block_pallas.3} parent=27 // pred_check_branch
        %191 = sbr.rel (%p189) target = $region36
      $region35: #{residual_block_pallas.3} parent=27 // pred_region
        %s192 = smul.u32 5, %s11
        %p193 = scmp.lt.s32.totalorder %s192, 9
        %s194 = scalar_select %p193, %s192, 9
        %s195 = smul.addr %s194, 4
        %s196 = scalar_lea.vmem %s2, %s195
        %s197 = smul.u32 5, %s11
      $region36: #{residual_block_pallas.3} parent=27 // pred_fallthru
        _
    $region28: #{residual_block_pallas.3} parent=5 // pred_fallthru
      _
    %p198 = scmp.le.s32.totalorder 1, %s11
    %p199 = scmp.lt.s32.totalorder %s11, 3
    %p200 = pnand %p198, %p199
    %p201 = pneg %p200
    // Predicated region
    $region37: #{residual_block_pallas.3} parent=5 // pred_check
      _
    $region38: #{residual_block_pallas.3} parent=5 // pred_check_branch
      %203 = sbr.rel (%p200) target = $region40
    $region39: #{residual_block_pallas.3} parent=5 // pred_region
      %s204 = ssub.s32 %s11, 1
      %s205 = smul.u32 5, %s16
      %p206 = scmp.lt.s32.totalorder %s205, 9
      %s207 = scalar_select %p206, %s205, 9
      %s208 = smul.addr %s207, 4
      %s209 = scalar_lea.vmem %s0, %s208
      %p210 = pneg %p37
      %p211 = pneg %p34
      %p212 = pneg %p58
      %p213 = pneg %p55
      %s214 = smul.u32 5, %s16
      %p215 = scmp.lt.s32.totalorder %s214, 9
      %s216 = scalar_select %p215, %s214, 9
      %s217 = smul.addr %s216, 4
      %s218 = scalar_lea.vmem %s2, %s217
      %p219 = pneg %p84
      %p220 = pneg %p81
      %p221 = pneg %p105
      %p222 = pneg %p102
      %p223 = pneg %p126
      %p224 = pneg %p123
      %p225 = pneg %p152
      %p226 = pneg %p149
      %s227 = smul.u32 5, %s16
      %p228 = scmp.lt.s32.totalorder %s227, 9
      %s229 = scalar_select %p228, %s227, 9
      %s230 = smul.addr %s229, 8
      %s231 = scalar_lea.vmem %s5, %s230
      %s232 = smul.u32 5, %s16
      %p233 = scmp.lt.s32.totalorder %s232, 9
      %s234 = scalar_select %p233, %s232, 9
      %s235 = smul.addr %s234, 4
      %s236 = scalar_lea.vmem %s0, %s235
      %s237 = smul.u32 5, %s16
      %s238 = smul.u32 5, %s16
      %p239 = scmp.lt.s32.totalorder %s238, 9
      %s240 = scalar_select %p239, %s238, 9
      %s241 = smul.addr %s240, 4
      %s242 = scalar_lea.vmem %s2, %s241
      %s243 = smul.u32 5, %s16
      %s244 = smul.u32 5, %s16
      %p245 = scmp.lt.s32.totalorder %s244, 9
      %s246 = scalar_select %p245, %s244, 9
      %s247 = smul.addr %s246, 8
      %s248 = scalar_lea.vmem %s5, %s247
      %s249 = smul.u32 5, %s16
      %v251 = vld [vmem:[%s236] sm:$0xf]
      %v252 = vld [vmem:[%s236 + $0x4] sm:$0xf]
      %v253 = vld [vmem:[%s236 + $0x8] sm:$0xf]
      %v254 = vld [vmem:[%s236 + $0xc] sm:$0xf]
      %v255 = vld [vmem:[%s236 + $0x10] sm:$0xf]
      %v256 = vld [vmem:[%s1] sm:$0xf]
      %v257 = vld [vmem:[%s1 + $0x4] sm:$0xf]
      %v258 = vld [vmem:[%s1 + $0x8] sm:$0xf]
      %v259 = vld [vmem:[%s1 + $0xc] sm:$0xf]
      %v260 = vld [vmem:[%s1 + $0x10] sm:$0xf]
      %v261 = vld [vmem:[%s1 + $0x14] sm:$0xf]
      %v262 = vld [vmem:[%s1 + $0x18] sm:$0xf]
      %v263 = vld [vmem:[%s1 + $0x1c] sm:$0xf]
      %v264 = vld [vmem:[%s1 + $0x20] sm:$0xf]
      %v265 = vld [vmem:[%s242] sm:$0xf]
      %v266 = vld [vmem:[%s242 + $0x4] sm:$0xf]
      %v267 = vld [vmem:[%s242 + $0x8] sm:$0xf]
      %v268 = vld [vmem:[%s242 + $0xc] sm:$0xf]
      %v269 = vld [vmem:[%s242 + $0x10] sm:$0xf]
      %v270 = vld [vmem:[%s3] sm:$0xf]
      %v271 = vld [vmem:[%s3 + $0x4] sm:$0xf]
      %v272 = vld [vmem:[%s3 + $0x8] sm:$0xf]
      %v273 = vld [vmem:[%s3 + $0xc] sm:$0xf]
      %v274 = vld [vmem:[%s3 + $0x10] sm:$0x3]
      %v280 = vunpack.c.l.b16 %v265
      %v281 = vunpack.c.l.b16 %v266
      %v282 = vunpack.c.l.b16 %v267
      %v283 = vunpack.c.l.b16 %v268
      %v284 = vunpack.c.l.b16 %v269
      %v285 = vpack.c.b16 %v281, %v280
      %v286 = vpack.c.b16 %v283, %v282
      %v287 = vpack.c.b16 %v284, %v284
      %v293 = vunpack.c.l.b16 %v270
      %v294 = vunpack.c.l.b16 %v271
      %v295 = vunpack.c.l.b16 %v272
      %v296 = vunpack.c.l.b16 %v273
      %v297 = vunpack.c.l.b16 %v274
      %v298 = vpack.c.b16 %v294, %v293
      %v299 = vpack.c.b16 %v296, %v295
      %v300 = vpack.c.b16 %v297, %v297
      %vm303 = vcmask 293888
      %v305 = vsel %vm303, %v285, 0
      %v308 = vsel %vm303, %v286, 0
      %v311 = vsel %vm303, %v287, 0
      %vm313 = vcmask 1041408
      %v315 = vsel %vm313, %v300, 0
      %317 = vmatprep.subr.bf16.mxu0 0
      %318 = vmatpush1.bf16.msra.mxu0 %v298
      %319 = vmatprep.subr.bf16.mxu0 0
      %320 = vmatpush1.bf16.msra.mxu0 %v299
      %321 = vmatprep.subr.bf16.mxu0 0
      %322 = vmatpush1.bf16.msra.mxu0 %v315
      %323 = vmatprep.subr.bf16.mxu0 0
      %324 = vmatpush1.bf16.msra.mxu0 0
      %325 = vmatprep.subr.bf16.mxu0 0
      %326 = vmatpush1.bf16.msra.mxu0 0
      %327 = vmatprep.subr.bf16.mxu0 0
      %328 = vmatpush1.bf16.msra.mxu0 0
      %329 = vmatprep.subr.bf16.mxu0 0
      %330 = vmatpush1.bf16.msra.mxu0 0
      %331 = vmatprep.subr.bf16.mxu0 0
      %332 = vmatpush1.bf16.msra.mxu0 0
      %333 = vmatprep.subr.bf16.mxu0 0
      %334 = vmatpush1.bf16.msra.mxu0 0
      %335 = vmatprep.subr.bf16.mxu0 0
      %336 = vmatpush1.bf16.msra.mxu0 0
      %337 = vmatprep.subr.bf16.mxu0 0
      %338 = vmatpush1.bf16.msra.mxu0 0
      %339 = vmatprep.subr.bf16.mxu0 0
      %340 = vmatpush1.bf16.msra.mxu0 0
      %341 = vmatprep.subr.bf16.mxu0 0
      %342 = vmatpush1.bf16.msra.mxu0 0
      %343 = vmatprep.subr.bf16.mxu0 0
      %344 = vmatpush1.bf16.msra.mxu0 0
      %345 = vmatprep.subr.bf16.mxu0 0
      %346 = vmatpush1.bf16.msra.mxu0 0
      %347 = vmatprep.subr.bf16.mxu0 0
      %348 = vmatpush1.bf16.msra.mxu0 0
      %349 = vmatprep.mubr.bf16.mxu0 0
      %350 = vmatmul.mubr.bf16.gmra.mrb[0].mxu0 %v305
      %v351 = vpop.f32.mrb[0].mxu0
      %v352 = vadd.f32 0.0, %v351
      %v353 = vpop.f32.mrb[0].mxu0
      %v354 = vpop.f32.mrb[0].mxu0
      %v355 = vadd.f32 0.0, %v354
      %v356 = vpop.f32.mrb[0].mxu0
      %357 = vmatprep.mubr.bf16.mxu0 0
      %358 = vmatmul.mubr.bf16.gmra.mrb[0].mxu0 %v308
      %v359 = vpop.f32.mrb[0].mxu0
      %v360 = vadd.f32 0.0, %v359
      %v361 = vpop.f32.mrb[0].mxu0
      %v362 = vpop.f32.mrb[0].mxu0
      %v363 = vadd.f32 0.0, %v362
      %v364 = vpop.f32.mrb[0].mxu0
      %365 = vmatprep.mubr.bf16.mxu0 0
      %366 = vmatmul.mubr.bf16.gmra.mrb[0].mxu0 %v311
      %v367 = vpop.f32.mrb[0].mxu0
      %v368 = vadd.f32 0.0, %v367
      %v369 = vpop.f32.mrb[0].mxu0
      %v370 = vpop.f32.mrb[0].mxu0
      %v371 = vpop.f32.mrb[0].mxu0
      %372 = vdwg.mxu0
      %v378 = vunpack.c.l.b16 %v251
      %v379 = vunpack.c.l.b16 %v252
      %v380 = vunpack.c.l.b16 %v253
      %v381 = vunpack.c.l.b16 %v254
      %v382 = vunpack.c.l.b16 %v255
      %v383 = vpack.c.b16 %v379, %v378
      %v384 = vpack.c.b16 %v381, %v380
      %v385 = vpack.c.b16 %v382, %v382
      %v395 = vunpack.c.l.b16 %v256
      %v396 = vunpack.c.l.b16 %v257
      %v397 = vunpack.c.l.b16 %v258
      %v398 = vunpack.c.l.b16 %v259
      %v399 = vunpack.c.l.b16 %v260
      %v400 = vunpack.c.l.b16 %v261
      %v401 = vunpack.c.l.b16 %v262
      %v402 = vunpack.c.l.b16 %v263
      %v403 = vunpack.c.l.b16 %v264
      %v404 = vpack.c.b16 %v396, %v395
      %v405 = vpack.c.b16 %v398, %v397
      %v406 = vpack.c.b16 %v400, %v399
      %v407 = vpack.c.b16 %v402, %v401
      %v408 = vpack.c.b16 %v403, %v403
      %vm413 = vcmask 588800
      %v415 = vsel %vm413, %v383, 0
      %v418 = vsel %vm413, %v384, 0
      %v421 = vsel %vm413, %v385, 0
      %vm423 = vcmask 1043456
      %v425 = vsel %vm423, %v408, 0
      %427 = vmatprep.subr.bf16.mxu0 0
      %428 = vmatpush1.bf16.msra.mxu0 %v404
      %429 = vmatprep.subr.bf16.mxu0 0
      %430 = vmatpush1.bf16.msra.mxu0 %v405
      %431 = vmatprep.subr.bf16.mxu0 0
      %432 = vmatpush1.bf16.msra.mxu0 %v406
      %433 = vmatprep.subr.bf16.mxu0 0
      %434 = vmatpush1.bf16.msra.mxu0 %v407
      %435 = vmatprep.subr.bf16.mxu0 0
      %436 = vmatpush1.bf16.msra.mxu0 %v425
      %437 = vmatprep.subr.bf16.mxu0 0
      %438 = vmatpush1.bf16.msra.mxu0 0
      %439 = vmatprep.subr.bf16.mxu0 0
      %440 = vmatpush1.bf16.msra.mxu0 0
      %441 = vmatprep.subr.bf16.mxu0 0
      %442 = vmatpush1.bf16.msra.mxu0 0
      %443 = vmatprep.subr.bf16.mxu0 0
      %444 = vmatpush1.bf16.msra.mxu0 0
      %445 = vmatprep.subr.bf16.mxu0 0
      %446 = vmatpush1.bf16.msra.mxu0 0
      %447 = vmatprep.subr.bf16.mxu0 0
      %448 = vmatpush1.bf16.msra.mxu0 0
      %449 = vmatprep.subr.bf16.mxu0 0
      %450 = vmatpush1.bf16.msra.mxu0 0
      %451 = vmatprep.subr.bf16.mxu0 0
      %452 = vmatpush1.bf16.msra.mxu0 0
      %453 = vmatprep.subr.bf16.mxu0 0
      %454 = vmatpush1.bf16.msra.mxu0 0
      %455 = vmatprep.subr.bf16.mxu0 0
      %456 = vmatpush1.bf16.msra.mxu0 0
      %457 = vmatprep.subr.bf16.mxu0 0
      %458 = vmatpush1.bf16.msra.mxu0 0
      %459 = vmatprep.mubr.bf16.mxu0 0
      %460 = vmatmul.mubr.bf16.gmra.mrb[0].mxu0 %v415
      %v461 = vpop.f32.mrb[0].mxu0
      %v462 = vadd.f32 %v352, %v461
      %v463 = vpop.f32.mrb[0].mxu0
      %v464 = vpop.f32.mrb[0].mxu0
      %v465 = vadd.f32 %v355, %v464
      %v466 = vpop.f32.mrb[0].mxu0
      %467 = vmatprep.mubr.bf16.mxu0 0
      %468 = vmatmul.mubr.bf16.gmra.mrb[0].mxu0 %v418
      %v469 = vpop.f32.mrb[0].mxu0
      %v470 = vadd.f32 %v360, %v469
      %v471 = vpop.f32.mrb[0].mxu0
      %v472 = vpop.f32.mrb[0].mxu0
      %v473 = vadd.f32 %v363, %v472
      %v474 = vpop.f32.mrb[0].mxu0
      %475 = vmatprep.mubr.bf16.mxu0 0
      %476 = vmatmul.mubr.bf16.gmra.mrb[0].mxu0 %v421
      %v477 = vpop.f32.mrb[0].mxu0
      %v478 = vadd.f32 %v368, %v477
      %v479 = vpop.f32.mrb[0].mxu0
      %v480 = vpop.f32.mrb[0].mxu0
      %v481 = vpop.f32.mrb[0].mxu0
      %482 = vdwg.mxu0
      %v483 = vld [vmem:[%s4] sm:$0x1]
      %v485 = vlaneseq
      %v486 = vshrl.u32 %v485, 7
      %v487 = vsub.s32 0, %v486
      %v488 = vrot.slane %v483, %v487
      %v490 = vadd.f32 %v462, %v488
      %v491 = vadd.f32 %v465, %v488
      %v492 = vadd.f32 %v470, %v488
      %v493 = vadd.f32 %v473, %v488
      %v494 = vadd.f32 %v478, %v488
      %495 = vst [vmem:[%s248] sm:$0xff] %v490
      %496 = vst [vmem:[%s248 + $0x8] sm:$0xff] %v491
      %497 = vst [vmem:[%s248 + $0x10] sm:$0xff] %v492
      %498 = vst [vmem:[%s248 + $0x18] sm:$0xff] %v493
      %499 = vst [vmem:[%s248 + $0x20] sm:$0xff] %v494
      %s500 = smul.u32 5, %s16
      %p501 = scmp.lt.s32.totalorder %s500, 9
      %s502 = scalar_select %p501, %s500, 9
      %s503 = smul.addr %s502, 8
      %s504 = scalar_lea.vmem %s5, %s503
      // Predicated region
      $region41: #{residual_block_pallas.3} parent=39 // pred_check
        %p505 = pneg %p149
      $region42: #{residual_block_pallas.3} parent=39 // pred_check_branch
        %507 = sbr.rel (%p505) target = $region44
      $region43: #{residual_block_pallas.3} parent=39 // pred_region
        %s508 = smul.u32 5, %s16
      $region44: #{residual_block_pallas.3} parent=39 // pred_fallthru
        _
    $region40: #{residual_block_pallas.3} parent=5 // pred_fallthru
      _
    %p509 = scmp.le.s32.totalorder 2, %s11
    // Predicated region
    $region45: #{residual_block_pallas.3} parent=5 // pred_check
      %p510 = pneg %p509
    $region46: #{residual_block_pallas.3} parent=5 // pred_check_branch
      %512 = sbr.rel (%p510) target = $region48
    $region47: #{residual_block_pallas.3} parent=5 // pred_region
      %s513 = ssub.s32 %s11, 2
      // Predicated region
      $region49: #{residual_block_pallas.3} parent=47 // pred_check
        %p514 = pneg %p155
      $region50: #{residual_block_pallas.3} parent=47 // pred_check_branch
        %516 = sbr.rel (%p514) target = $region52
      $region51: #{residual_block_pallas.3} parent=47 // pred_region
        %s517 = smul.u32 5, %s17
        %p518 = scmp.lt.s32.totalorder %s517, 9
        %s519 = scalar_select %p518, %s517, 9
        %s520 = smul.addr %s519, 8
        %s521 = scalar_lea.vmem %s5, %s520
      $region52: #{residual_block_pallas.3} parent=47 // pred_fallthru
        _
    $region48: #{residual_block_pallas.3} parent=5 // pred_fallthru
      _
  $region6: #{residual_block_pallas.3} parent=0 // loop_footer
    %s15 = sadd.s32 1, %s11
  $region7: #{residual_block_pallas.3} parent=0 // loop_footer_branch
    %10 = sbr.rel target = $region3
  $region8: #{residual_block_pallas.3} parent=0 // loop_exit
    _

</llo_original>
